<compile_context>
chip_gen: v7x
topology: tpu7x:2x2x1
jax: 0.10.0
libtpu: 0.0.40
codegen_flags: <defaults>
</compile_context>

<pallas_src>
import jax
import jax.numpy as jnp
from jax.experimental import pallas as pl
from jax.experimental.pallas import tpu as pltpu

NUM_CLASSES = 8            # torch.nn.functional.one_hot(..., num_classes=8) is hardcoded
_LANES = 128
_SUBLANES = 8
_TILE_ROWS = 1024          # (1024, 128) int32 tile = 512 KiB per input per buffer
_PAD_CLASS = NUM_CLASSES   # matches no class in [0, NUM_CLASSES)


def _make_counts_kernel(tiles_per_core, tile_rows, rows, needs_mask):
    """out_ref: (3*NUM_CLASSES, 128) int32 per-core, per-lane partial counts.
       rows 0..7  = per-class intersection, 8..15 = target counts, 16..23 = pred counts."""

    def kernel(p_ref, t_ref, out_ref):
        core = pl.program_id(0)
        step = pl.program_id(1)

        @pl.when(step == 0)
        def _init():
            out_ref[...] = jnp.zeros_like(out_ref)

        p = p_ref[...]          # (tile_rows, 128) int32
        t = t_ref[...]

        if needs_mask:
            # Mask rows past the end of the data (partial last tile, or the
            # clamped duplicate tile of the second core when the tile count is odd).
            tile_idx = core * tiles_per_core + step
            row0 = tile_idx * tile_rows
            rid = jax.lax.broadcasted_iota(jnp.int32, (tile_rows, _LANES), 0)
            valid = (row0 + rid) < rows
            p = jnp.where(valid, p, _PAD_CLASS)
            t = jnp.where(valid, t, _PAD_CLASS)

        # Unrolled per-class compare + sublane reduction; accumulate per-lane
        # partial sums in int32 (exact), no f32 one-hot intermediates.
        for cls in range(NUM_CLASSES):
            p_eq = p == cls
            t_eq = t == cls
            both = jnp.logical_and(p_eq, t_eq)
            inter = jnp.sum(both.astype(jnp.int32), axis=0)   # (128,)
            tcnt = jnp.sum(t_eq.astype(jnp.int32), axis=0)    # (128,)
            pcnt = jnp.sum(p_eq.astype(jnp.int32), axis=0)    # (128,)
            out_ref[cls] = out_ref[cls] + inter
            out_ref[NUM_CLASSES + cls] = out_ref[NUM_CLASSES + cls] + tcnt
            out_ref[2 * NUM_CLASSES + cls] = out_ref[2 * NUM_CLASSES + cls] + pcnt

    return kernel


def _dice_counts(pred_flat, target_flat):
    """Returns (3, NUM_CLASSES) f32: per-class intersection, target count, pred count."""
    n = pred_flat.shape[0]
    # TODO(synk): if upstream labels arrive as int8/uint8, feed them straight through
    # (4x less HBM traffic) instead of widening to int32 here.
    p = pred_flat.astype(jnp.int32)
    t = target_flat.astype(jnp.int32)

    # Only pad misaligned inputs up to the next (8*128) boundary; the common
    # aligned case is a free reshape (no extra HBM traffic).
    pad = (-n) % (_SUBLANES * _LANES)
    if pad:
        p = jnp.pad(p, (0, pad), constant_values=_PAD_CLASS)
        t = jnp.pad(t, (0, pad), constant_values=_PAD_CLASS)
    rows = (n + pad) // _LANES
    p2 = p.reshape(rows, _LANES)
    t2 = t.reshape(rows, _LANES)

    tile_rows = min(_TILE_ROWS, rows)              # multiple of 8 by construction
    tiles_total = pl.cdiv(rows, tile_rows)
    tiles_per_core = pl.cdiv(tiles_total, 2)       # leading "parallel" axis -> 2 TCs on v7x
    needs_mask = (2 * tiles_per_core * tile_rows) != rows

    def in_index_map(core, step):
        idx = core * tiles_per_core + step
        if needs_mask:
            # Clamp so the DMA stays in bounds; clamped duplicates are fully masked in-kernel.
            idx = jnp.minimum(idx, tiles_total - 1)
        return (idx, 0)

    kernel = _make_counts_kernel(tiles_per_core, tile_rows, rows, needs_mask)

    counts = pl.pallas_call(
        kernel,
        out_shape=jax.ShapeDtypeStruct((2, 3 * NUM_CLASSES, _LANES), jnp.int32),
        grid=(2, tiles_per_core),
        in_specs=[
            pl.BlockSpec((tile_rows, _LANES), in_index_map),
            pl.BlockSpec((tile_rows, _LANES), in_index_map),
        ],
        out_specs=pl.BlockSpec((None, 3 * NUM_CLASSES, _LANES),
                               lambda core, step: (core, 0, 0)),
        compiler_params=pltpu.CompilerParams(
            dimension_semantics=("parallel", "arbitrary"),
        ),
    )(p2, t2)

    # Tiny final reduction over the 2 cores and 128 lanes in plain XLA (exact int32).
    totals = counts.sum(axis=(0, 2)).astype(jnp.float32)      # (3*NUM_CLASSES,)
    return totals.reshape(3, NUM_CLASSES)


def dice_score(pred, target, num_classes=NUM_CLASSES, ignore_back=None, mean_loss=False):
    """JAX/Pallas equivalent of DiceScore.forward.

    Returns a (num_valid_classes,) array of per-class dice values when
    mean_loss=False (the PyTorch module returns them as a python list), or the
    scalar 1 - mean(dice) when mean_loss=True.
    """
    counts = _dice_counts(jnp.ravel(pred), jnp.ravel(target))
    inter, t_sum, p_sum = counts[0], counts[1], counts[2]
    denum = t_sum + p_sum
    dice_all = jnp.where(denum == 0, 1.0,
                         2.0 * inter / jnp.where(denum == 0, 1.0, denum))   # (NUM_CLASSES,)

    keep = [c for c in range(num_classes) if c != ignore_back]
    dice = dice_all[jnp.asarray(keep, dtype=jnp.int32)]
    if mean_loss:
        return 1.0 - jnp.mean(dice)
    return dice


def _dice_reference(pred, target, num_classes=NUM_CLASSES, ignore_back=None, mean_loss=False):
    """Pure-JAX reference mirroring the PyTorch forward exactly."""
    t = jnp.ravel(target).astype(jnp.int32)
    p = jnp.ravel(pred).astype(jnp.int32)
    t_oh = jax.nn.one_hot(t, NUM_CLASSES, dtype=jnp.float32)
    p_oh = jax.nn.one_hot(p, NUM_CLASSES, dtype=jnp.float32)
    dice = []
    for c in range(num_classes):
        if c == ignore_back:
            continue
        res = jnp.sum(t_oh[:, c] * p_oh[:, c])
        den = jnp.sum(t_oh[:, c]) + jnp.sum(p_oh[:, c])
        dice.append(jnp.where(den == 0, 1.0, 2.0 * res / jnp.where(den == 0, 1.0, den)))
    dice = jnp.stack(dice)
    if mean_loss:
        return 1.0 - jnp.mean(dice)
    return dice


if __name__ == "__main__":
    key = jax.random.PRNGKey(0)
    kp, kt = jax.random.split(key)

    # small segmentation-style label maps: batch=2, spatial=16x16, classes in [0, 8)
    pred = jax.random.randint(kp, (2, 16, 16), 0, NUM_CLASSES, dtype=jnp.int32)
    target = jax.random.randint(kt, (2, 16, 16), 0, NUM_CLASSES, dtype=jnp.int32)

    out = jax.block_until_ready(dice_score(pred, target))
    ref = jax.block_until_ready(_dice_reference(pred, target))
    assert out.shape == ref.shape
    assert jnp.allclose(out, ref, atol=1e-6), (out, ref)

    # mean_loss / ignore_back branches
    loss = jax.block_until_ready(dice_score(pred, target, ignore_back=0, mean_loss=True))
    loss_ref = jax.block_until_ready(_dice_reference(pred, target, ignore_back=0, mean_loss=True))
    assert jnp.allclose(loss, loss_ref, atol=1e-6), (loss, loss_ref)

    # misaligned size -> exercises the pad + in-kernel tail masking path
    kp2, kt2 = jax.random.split(kt)
    pred_m = jax.random.randint(kp2, (3, 37, 53), 0, NUM_CLASSES, dtype=jnp.int32)
    target_m = jax.random.randint(kt2, (3, 37, 53), 0, NUM_CLASSES, dtype=jnp.int32)
    out_m = jax.block_until_ready(dice_score(pred_m, target_m))
    ref_m = jax.block_until_ready(_dice_reference(pred_m, target_m))
    assert jnp.allclose(out_m, ref_m, atol=1e-6), (out_m, ref_m)

    # larger aligned size -> exercises the multi-tile, unmasked 2-core-split path
    kp3, kt3 = jax.random.split(kp2)
    pred_b = jax.random.randint(kp3, (2, 512, 512), 0, NUM_CLASSES, dtype=jnp.int32)
    target_b = jax.random.randint(kt3, (2, 512, 512), 0, NUM_CLASSES, dtype=jnp.int32)
    out_b = jax.block_until_ready(dice_score(pred_b, target_b))
    ref_b = jax.block_until_ready(_dice_reference(pred_b, target_b))
    assert jnp.allclose(out_b, ref_b, atol=1e-6), (out_b, ref_b)

    print("KERNEL_OK")
</pallas_src>

<mosaic_0001>
module attributes {stable_mosaic.version = 11 : i64} {
  func.func @kernel(%arg0: i32, %arg1: i32, %arg2: memref<8x128xi32, #tpu.memory_space<vmem>>, %arg3: memref<8x128xi32, #tpu.memory_space<vmem>>, %arg4: memref<1x24x128xi32, #tpu.memory_space<vmem>>) attributes {dimension_semantics = [#tpu.dimension_semantics<parallel>, #tpu.dimension_semantics<arbitrary>], iteration_bounds = array<i64: 2, 1>, scalar_prefetch = 0 : i64, scratch_operands = 0 : i64, tpu.core_type = #tpu.core_type<tc>, window_params = [{transform_indices = @transform_0, window_bounds = array<i64: 8, 128>}, {transform_indices = @transform_1, window_bounds = array<i64: 8, 128>}, {transform_indices = @transform_2, window_bounds = array<i64: 1, 24, 128>}]} {
    %c0_i32 = arith.constant 0 : i32
    %0 = arith.cmpi eq, %arg1, %c0_i32 : i32
    %1 = arith.extui %0 : i1 to i32
    %c0_i32_0 = arith.constant 0 : i32
    %2 = arith.cmpi ne, %1, %c0_i32_0 : i32
    scf.if %2 {
      %c0_i32_161 = arith.constant 0 : i32
      %249 = vector.broadcast %c0_i32_161 : i32 to vector<24x128xi32>
      %c0_162 = arith.constant 0 : index
      %c0_163 = arith.constant 0 : index
      %c0_164 = arith.constant 0 : index
      %250 = vector.load %arg4[%c0_162, %c0_163, %c0_164] : memref<1x24x128xi32, #tpu.memory_space<vmem>>, vector<1x24x128xi32>
      %251 = vector.shape_cast %250 : vector<1x24x128xi32> to vector<24x128xi32>
      %252 = vector.shape_cast %249 : vector<24x128xi32> to vector<1x24x128xi32>
      tpu.vector_store %arg4[%c0_162, %c0_163, %c0_164], %252 {strides = array<i32>} : memref<1x24x128xi32, #tpu.memory_space<vmem>>, vector<1x24x128xi32>,
    } else {
    }
    %c0 = arith.constant 0 : index
    %c0_1 = arith.constant 0 : index
    %3 = vector.load %arg2[%c0, %c0_1] : memref<8x128xi32, #tpu.memory_space<vmem>>, vector<8x128xi32>
    %c0_2 = arith.constant 0 : index
    %c0_3 = arith.constant 0 : index
    %4 = vector.load %arg3[%c0_2, %c0_3] : memref<8x128xi32, #tpu.memory_space<vmem>>, vector<8x128xi32>
    %c1_i32 = arith.constant 1 : i32
    %5 = arith.muli %arg0, %c1_i32 : i32
    %6 = arith.addi %5, %arg1 : i32
    %c8_i32 = arith.constant 8 : i32
    %7 = arith.muli %6, %c8_i32 : i32
    %8 = tpu.iota {dimensions = array<i32: 0>} : vector<8x128xi32>
    %9 = vector.broadcast %7 : i32 to vector<8x128xi32>
    %10 = arith.addi %9, %8 : vector<8x128xi32>
    %c8_i32_4 = arith.constant 8 : i32
    %11 = vector.broadcast %c8_i32_4 : i32 to vector<8x128xi32>
    %12 = arith.cmpi slt, %10, %11 : vector<8x128xi32>
    %c8_i32_5 = arith.constant 8 : i32
    %13 = vector.broadcast %c8_i32_5 : i32 to vector<8x128xi32>
    %14 = arith.select %12, %3, %13 : vector<8x128xi1>, vector<8x128xi32>
    %c8_i32_6 = arith.constant 8 : i32
    %15 = vector.broadcast %c8_i32_6 : i32 to vector<8x128xi32>
    %16 = arith.select %12, %4, %15 : vector<8x128xi1>, vector<8x128xi32>
    %c0_i32_7 = arith.constant 0 : i32
    %17 = vector.broadcast %c0_i32_7 : i32 to vector<8x128xi32>
    %18 = arith.cmpi eq, %14, %17 : vector<8x128xi32>
    %c0_i32_8 = arith.constant 0 : i32
    %19 = vector.broadcast %c0_i32_8 : i32 to vector<8x128xi32>
    %20 = arith.cmpi eq, %16, %19 : vector<8x128xi32>
    %21 = arith.andi %18, %20 : vector<8x128xi1>
    %22 = arith.extui %21 : vector<8x128xi1> to vector<8x128xi32>
    %cst = arith.constant dense<0> : vector<128xi32>
    %23 = vector.multi_reduction <add>, %22, %cst [0] : vector<8x128xi32> to vector<128xi32>
    %24 = arith.extui %20 : vector<8x128xi1> to vector<8x128xi32>
    %cst_9 = arith.constant dense<0> : vector<128xi32>
    %25 = vector.multi_reduction <add>, %24, %cst_9 [0] : vector<8x128xi32> to vector<128xi32>
    %26 = arith.extui %18 : vector<8x128xi1> to vector<8x128xi32>
    %cst_10 = arith.constant dense<0> : vector<128xi32>
    %27 = vector.multi_reduction <add>, %26, %cst_10 [0] : vector<8x128xi32> to vector<128xi32>
    %c0_11 = arith.constant 0 : index
    %c0_12 = arith.constant 0 : index
    %c0_13 = arith.constant 0 : index
    %28 = vector.load %arg4[%c0_11, %c0_12, %c0_13] : memref<1x24x128xi32, #tpu.memory_space<vmem>>, vector<1x1x128xi32>
    %29 = vector.shape_cast %28 : vector<1x1x128xi32> to vector<128xi32>
    %30 = arith.addi %29, %23 : vector<128xi32>
    %c0_14 = arith.constant 0 : index
    %c0_15 = arith.constant 0 : index
    %c0_16 = arith.constant 0 : index
    %31 = vector.load %arg4[%c0_14, %c0_15, %c0_16] : memref<1x24x128xi32, #tpu.memory_space<vmem>>, vector<1x1x128xi32>
    %32 = vector.shape_cast %31 : vector<1x1x128xi32> to vector<128xi32>
    %33 = vector.shape_cast %30 : vector<128xi32> to vector<1x1x128xi32>
    tpu.vector_store %arg4[%c0_14, %c0_15, %c0_16], %33 {strides = array<i32>} : memref<1x24x128xi32, #tpu.memory_space<vmem>>, vector<1x1x128xi32>,
    %c0_17 = arith.constant 0 : index
    %c8 = arith.constant 8 : index
    %c0_18 = arith.constant 0 : index
    %34 = vector.load %arg4[%c0_17, %c8, %c0_18] : memref<1x24x128xi32, #tpu.memory_space<vmem>>, vector<1x1x128xi32>
    %35 = vector.shape_cast %34 : vector<1x1x128xi32> to vector<128xi32>
    %36 = arith.addi %35, %25 : vector<128xi32>
    %c0_19 = arith.constant 0 : index
    %c8_20 = arith.constant 8 : index
    %c0_21 = arith.constant 0 : index
    %37 = vector.load %arg4[%c0_19, %c8_20, %c0_21] : memref<1x24x128xi32, #tpu.memory_space<vmem>>, vector<1x1x128xi32>
    %38 = vector.shape_cast %37 : vector<1x1x128xi32> to vector<128xi32>
    %39 = vector.shape_cast %36 : vector<128xi32> to vector<1x1x128xi32>
    tpu.vector_store %arg4[%c0_19, %c8_20, %c0_21], %39 {strides = array<i32>} : memref<1x24x128xi32, #tpu.memory_space<vmem>>, vector<1x1x128xi32>,
    %c0_22 = arith.constant 0 : index
    %c16 = arith.constant 16 : index
    %c0_23 = arith.constant 0 : index
    %40 = vector.load %arg4[%c0_22, %c16, %c0_23] : memref<1x24x128xi32, #tpu.memory_space<vmem>>, vector<1x1x128xi32>
    %41 = vector.shape_cast %40 : vector<1x1x128xi32> to vector<128xi32>
    %42 = arith.addi %41, %27 : vector<128xi32>
    %c0_24 = arith.constant 0 : index
    %c16_25 = arith.constant 16 : index
    %c0_26 = arith.constant 0 : index
    %43 = vector.load %arg4[%c0_24, %c16_25, %c0_26] : memref<1x24x128xi32, #tpu.memory_space<vmem>>, vector<1x1x128xi32>
    %44 = vector.shape_cast %43 : vector<1x1x128xi32> to vector<128xi32>
    %45 = vector.shape_cast %42 : vector<128xi32> to vector<1x1x128xi32>
    tpu.vector_store %arg4[%c0_24, %c16_25, %c0_26], %45 {strides = array<i32>} : memref<1x24x128xi32, #tpu.memory_space<vmem>>, vector<1x1x128xi32>,
    %c1_i32_27 = arith.constant 1 : i32
    %46 = vector.broadcast %c1_i32_27 : i32 to vector<8x128xi32>
    %47 = arith.cmpi eq, %14, %46 : vector<8x128xi32>
    %c1_i32_28 = arith.constant 1 : i32
    %48 = vector.broadcast %c1_i32_28 : i32 to vector<8x128xi32>
    %49 = arith.cmpi eq, %16, %48 : vector<8x128xi32>
    %50 = arith.andi %47, %49 : vector<8x128xi1>
    %51 = arith.extui %50 : vector<8x128xi1> to vector<8x128xi32>
    %cst_29 = arith.constant dense<0> : vector<128xi32>
    %52 = vector.multi_reduction <add>, %51, %cst_29 [0] : vector<8x128xi32> to vector<128xi32>
    %53 = arith.extui %49 : vector<8x128xi1> to vector<8x128xi32>
    %cst_30 = arith.constant dense<0> : vector<128xi32>
    %54 = vector.multi_reduction <add>, %53, %cst_30 [0] : vector<8x128xi32> to vector<128xi32>
    %55 = arith.extui %47 : vector<8x128xi1> to vector<8x128xi32>
    %cst_31 = arith.constant dense<0> : vector<128xi32>
    %56 = vector.multi_reduction <add>, %55, %cst_31 [0] : vector<8x128xi32> to vector<128xi32>
    %c0_32 = arith.constant 0 : index
    %c1 = arith.constant 1 : index
    %c0_33 = arith.constant 0 : index
    %57 = vector.load %arg4[%c0_32, %c1, %c0_33] : memref<1x24x128xi32, #tpu.memory_space<vmem>>, vector<1x1x128xi32>
    %58 = vector.shape_cast %57 : vector<1x1x128xi32> to vector<128xi32>
    %59 = arith.addi %58, %52 : vector<128xi32>
    %c0_34 = arith.constant 0 : index
    %c1_35 = arith.constant 1 : index
    %c0_36 = arith.constant 0 : index
    %60 = vector.load %arg4[%c0_34, %c1_35, %c0_36] : memref<1x24x128xi32, #tpu.memory_space<vmem>>, vector<1x1x128xi32>
    %61 = vector.shape_cast %60 : vector<1x1x128xi32> to vector<128xi32>
    %62 = vector.shape_cast %59 : vector<128xi32> to vector<1x1x128xi32>
    tpu.vector_store %arg4[%c0_34, %c1_35, %c0_36], %62 {strides = array<i32>} : memref<1x24x128xi32, #tpu.memory_space<vmem>>, vector<1x1x128xi32>,
    %c0_37 = arith.constant 0 : index
    %c9 = arith.constant 9 : index
    %c0_38 = arith.constant 0 : index
    %63 = vector.load %arg4[%c0_37, %c9, %c0_38] : memref<1x24x128xi32, #tpu.memory_space<vmem>>, vector<1x1x128xi32>
    %64 = vector.shape_cast %63 : vector<1x1x128xi32> to vector<128xi32>
    %65 = arith.addi %64, %54 : vector<128xi32>
    %c0_39 = arith.constant 0 : index
    %c9_40 = arith.constant 9 : index
    %c0_41 = arith.constant 0 : index
    %66 = vector.load %arg4[%c0_39, %c9_40, %c0_41] : memref<1x24x128xi32, #tpu.memory_space<vmem>>, vector<1x1x128xi32>
    %67 = vector.shape_cast %66 : vector<1x1x128xi32> to vector<128xi32>
    %68 = vector.shape_cast %65 : vector<128xi32> to vector<1x1x128xi32>
    tpu.vector_store %arg4[%c0_39, %c9_40, %c0_41], %68 {strides = array<i32>} : memref<1x24x128xi32, #tpu.memory_space<vmem>>, vector<1x1x128xi32>,
    %c0_42 = arith.constant 0 : index
    %c17 = arith.constant 17 : index
    %c0_43 = arith.constant 0 : index
    %69 = vector.load %arg4[%c0_42, %c17, %c0_43] : memref<1x24x128xi32, #tpu.memory_space<vmem>>, vector<1x1x128xi32>
    %70 = vector.shape_cast %69 : vector<1x1x128xi32> to vector<128xi32>
    %71 = arith.addi %70, %56 : vector<128xi32>
    %c0_44 = arith.constant 0 : index
    %c17_45 = arith.constant 17 : index
    %c0_46 = arith.constant 0 : index
    %72 = vector.load %arg4[%c0_44, %c17_45, %c0_46] : memref<1x24x128xi32, #tpu.memory_space<vmem>>, vector<1x1x128xi32>
    %73 = vector.shape_cast %72 : vector<1x1x128xi32> to vector<128xi32>
    %74 = vector.shape_cast %71 : vector<128xi32> to vector<1x1x128xi32>
    tpu.vector_store %arg4[%c0_44, %c17_45, %c0_46], %74 {strides = array<i32>} : memref<1x24x128xi32, #tpu.memory_space<vmem>>, vector<1x1x128xi32>,
    %c2_i32 = arith.constant 2 : i32
    %75 = vector.broadcast %c2_i32 : i32 to vector<8x128xi32>
    %76 = arith.cmpi eq, %14, %75 : vector<8x128xi32>
    %c2_i32_47 = arith.constant 2 : i32
    %77 = vector.broadcast %c2_i32_47 : i32 to vector<8x128xi32>
    %78 = arith.cmpi eq, %16, %77 : vector<8x128xi32>
    %79 = arith.andi %76, %78 : vector<8x128xi1>
    %80 = arith.extui %79 : vector<8x128xi1> to vector<8x128xi32>
    %cst_48 = arith.constant dense<0> : vector<128xi32>
    %81 = vector.multi_reduction <add>, %80, %cst_48 [0] : vector<8x128xi32> to vector<128xi32>
    %82 = arith.extui %78 : vector<8x128xi1> to vector<8x128xi32>
    %cst_49 = arith.constant dense<0> : vector<128xi32>
    %83 = vector.multi_reduction <add>, %82, %cst_49 [0] : vector<8x128xi32> to vector<128xi32>
    %84 = arith.extui %76 : vector<8x128xi1> to vector<8x128xi32>
    %cst_50 = arith.constant dense<0> : vector<128xi32>
    %85 = vector.multi_reduction <add>, %84, %cst_50 [0] : vector<8x128xi32> to vector<128xi32>
    %c0_51 = arith.constant 0 : index
    %c2 = arith.constant 2 : index
    %c0_52 = arith.constant 0 : index
    %86 = vector.load %arg4[%c0_51, %c2, %c0_52] : memref<1x24x128xi32, #tpu.memory_space<vmem>>, vector<1x1x128xi32>
    %87 = vector.shape_cast %86 : vector<1x1x128xi32> to vector<128xi32>
    %88 = arith.addi %87, %81 : vector<128xi32>
    %c0_53 = arith.constant 0 : index
    %c2_54 = arith.constant 2 : index
    %c0_55 = arith.constant 0 : index
    %89 = vector.load %arg4[%c0_53, %c2_54, %c0_55] : memref<1x24x128xi32, #tpu.memory_space<vmem>>, vector<1x1x128xi32>
    %90 = vector.shape_cast %89 : vector<1x1x128xi32> to vector<128xi32>
    %91 = vector.shape_cast %88 : vector<128xi32> to vector<1x1x128xi32>
    tpu.vector_store %arg4[%c0_53, %c2_54, %c0_55], %91 {strides = array<i32>} : memref<1x24x128xi32, #tpu.memory_space<vmem>>, vector<1x1x128xi32>,
    %c0_56 = arith.constant 0 : index
    %c10 = arith.constant 10 : index
    %c0_57 = arith.constant 0 : index
    %92 = vector.load %arg4[%c0_56, %c10, %c0_57] : memref<1x24x128xi32, #tpu.memory_space<vmem>>, vector<1x1x128xi32>
    %93 = vector.shape_cast %92 : vector<1x1x128xi32> to vector<128xi32>
    %94 = arith.addi %93, %83 : vector<128xi32>
    %c0_58 = arith.constant 0 : index
    %c10_59 = arith.constant 10 : index
    %c0_60 = arith.constant 0 : index
    %95 = vector.load %arg4[%c0_58, %c10_59, %c0_60] : memref<1x24x128xi32, #tpu.memory_space<vmem>>, vector<1x1x128xi32>
    %96 = vector.shape_cast %95 : vector<1x1x128xi32> to vector<128xi32>
    %97 = vector.shape_cast %94 : vector<128xi32> to vector<1x1x128xi32>
    tpu.vector_store %arg4[%c0_58, %c10_59, %c0_60], %97 {strides = array<i32>} : memref<1x24x128xi32, #tpu.memory_space<vmem>>, vector<1x1x128xi32>,
    %c0_61 = arith.constant 0 : index
    %c18 = arith.constant 18 : index
    %c0_62 = arith.constant 0 : index
    %98 = vector.load %arg4[%c0_61, %c18, %c0_62] : memref<1x24x128xi32, #tpu.memory_space<vmem>>, vector<1x1x128xi32>
    %99 = vector.shape_cast %98 : vector<1x1x128xi32> to vector<128xi32>
    %100 = arith.addi %99, %85 : vector<128xi32>
    %c0_63 = arith.constant 0 : index
    %c18_64 = arith.constant 18 : index
    %c0_65 = arith.constant 0 : index
    %101 = vector.load %arg4[%c0_63, %c18_64, %c0_65] : memref<1x24x128xi32, #tpu.memory_space<vmem>>, vector<1x1x128xi32>
    %102 = vector.shape_cast %101 : vector<1x1x128xi32> to vector<128xi32>
    %103 = vector.shape_cast %100 : vector<128xi32> to vector<1x1x128xi32>
    tpu.vector_store %arg4[%c0_63, %c18_64, %c0_65], %103 {strides = array<i32>} : memref<1x24x128xi32, #tpu.memory_space<vmem>>, vector<1x1x128xi32>,
    %c3_i32 = arith.constant 3 : i32
    %104 = vector.broadcast %c3_i32 : i32 to vector<8x128xi32>
    %105 = arith.cmpi eq, %14, %104 : vector<8x128xi32>
    %c3_i32_66 = arith.constant 3 : i32
    %106 = vector.broadcast %c3_i32_66 : i32 to vector<8x128xi32>
    %107 = arith.cmpi eq, %16, %106 : vector<8x128xi32>
    %108 = arith.andi %105, %107 : vector<8x128xi1>
    %109 = arith.extui %108 : vector<8x128xi1> to vector<8x128xi32>
    %cst_67 = arith.constant dense<0> : vector<128xi32>
    %110 = vector.multi_reduction <add>, %109, %cst_67 [0] : vector<8x128xi32> to vector<128xi32>
    %111 = arith.extui %107 : vector<8x128xi1> to vector<8x128xi32>
    %cst_68 = arith.constant dense<0> : vector<128xi32>
    %112 = vector.multi_reduction <add>, %111, %cst_68 [0] : vector<8x128xi32> to vector<128xi32>
    %113 = arith.extui %105 : vector<8x128xi1> to vector<8x128xi32>
    %cst_69 = arith.constant dense<0> : vector<128xi32>
    %114 = vector.multi_reduction <add>, %113, %cst_69 [0] : vector<8x128xi32> to vector<128xi32>
    %c0_70 = arith.constant 0 : index
    %c3 = arith.constant 3 : index
    %c0_71 = arith.constant 0 : index
    %115 = vector.load %arg4[%c0_70, %c3, %c0_71] : memref<1x24x128xi32, #tpu.memory_space<vmem>>, vector<1x1x128xi32>
    %116 = vector.shape_cast %115 : vector<1x1x128xi32> to vector<128xi32>
    %117 = arith.addi %116, %110 : vector<128xi32>
    %c0_72 = arith.constant 0 : index
    %c3_73 = arith.constant 3 : index
    %c0_74 = arith.constant 0 : index
    %118 = vector.load %arg4[%c0_72, %c3_73, %c0_74] : memref<1x24x128xi32, #tpu.memory_space<vmem>>, vector<1x1x128xi32>
    %119 = vector.shape_cast %118 : vector<1x1x128xi32> to vector<128xi32>
    %120 = vector.shape_cast %117 : vector<128xi32> to vector<1x1x128xi32>
    tpu.vector_store %arg4[%c0_72, %c3_73, %c0_74], %120 {strides = array<i32>} : memref<1x24x128xi32, #tpu.memory_space<vmem>>, vector<1x1x128xi32>,
    %c0_75 = arith.constant 0 : index
    %c11 = arith.constant 11 : index
    %c0_76 = arith.constant 0 : index
    %121 = vector.load %arg4[%c0_75, %c11, %c0_76] : memref<1x24x128xi32, #tpu.memory_space<vmem>>, vector<1x1x128xi32>
    %122 = vector.shape_cast %121 : vector<1x1x128xi32> to vector<128xi32>
    %123 = arith.addi %122, %112 : vector<128xi32>
    %c0_77 = arith.constant 0 : index
    %c11_78 = arith.constant 11 : index
    %c0_79 = arith.constant 0 : index
    %124 = vector.load %arg4[%c0_77, %c11_78, %c0_79] : memref<1x24x128xi32, #tpu.memory_space<vmem>>, vector<1x1x128xi32>
    %125 = vector.shape_cast %124 : vector<1x1x128xi32> to vector<128xi32>
    %126 = vector.shape_cast %123 : vector<128xi32> to vector<1x1x128xi32>
    tpu.vector_store %arg4[%c0_77, %c11_78, %c0_79], %126 {strides = array<i32>} : memref<1x24x128xi32, #tpu.memory_space<vmem>>, vector<1x1x128xi32>,
    %c0_80 = arith.constant 0 : index
    %c19 = arith.constant 19 : index
    %c0_81 = arith.constant 0 : index
    %127 = vector.load %arg4[%c0_80, %c19, %c0_81] : memref<1x24x128xi32, #tpu.memory_space<vmem>>, vector<1x1x128xi32>
    %128 = vector.shape_cast %127 : vector<1x1x128xi32> to vector<128xi32>
    %129 = arith.addi %128, %114 : vector<128xi32>
    %c0_82 = arith.constant 0 : index
    %c19_83 = arith.constant 19 : index
    %c0_84 = arith.constant 0 : index
    %130 = vector.load %arg4[%c0_82, %c19_83, %c0_84] : memref<1x24x128xi32, #tpu.memory_space<vmem>>, vector<1x1x128xi32>
    %131 = vector.shape_cast %130 : vector<1x1x128xi32> to vector<128xi32>
    %132 = vector.shape_cast %129 : vector<128xi32> to vector<1x1x128xi32>
    tpu.vector_store %arg4[%c0_82, %c19_83, %c0_84], %132 {strides = array<i32>} : memref<1x24x128xi32, #tpu.memory_space<vmem>>, vector<1x1x128xi32>,
    %c4_i32 = arith.constant 4 : i32
    %133 = vector.broadcast %c4_i32 : i32 to vector<8x128xi32>
    %134 = arith.cmpi eq, %14, %133 : vector<8x128xi32>
    %c4_i32_85 = arith.constant 4 : i32
    %135 = vector.broadcast %c4_i32_85 : i32 to vector<8x128xi32>
    %136 = arith.cmpi eq, %16, %135 : vector<8x128xi32>
    %137 = arith.andi %134, %136 : vector<8x128xi1>
    %138 = arith.extui %137 : vector<8x128xi1> to vector<8x128xi32>
    %cst_86 = arith.constant dense<0> : vector<128xi32>
    %139 = vector.multi_reduction <add>, %138, %cst_86 [0] : vector<8x128xi32> to vector<128xi32>
    %140 = arith.extui %136 : vector<8x128xi1> to vector<8x128xi32>
    %cst_87 = arith.constant dense<0> : vector<128xi32>
    %141 = vector.multi_reduction <add>, %140, %cst_87 [0] : vector<8x128xi32> to vector<128xi32>
    %142 = arith.extui %134 : vector<8x128xi1> to vector<8x128xi32>
    %cst_88 = arith.constant dense<0> : vector<128xi32>
    %143 = vector.multi_reduction <add>, %142, %cst_88 [0] : vector<8x128xi32> to vector<128xi32>
    %c0_89 = arith.constant 0 : index
    %c4 = arith.constant 4 : index
    %c0_90 = arith.constant 0 : index
    %144 = vector.load %arg4[%c0_89, %c4, %c0_90] : memref<1x24x128xi32, #tpu.memory_space<vmem>>, vector<1x1x128xi32>
    %145 = vector.shape_cast %144 : vector<1x1x128xi32> to vector<128xi32>
    %146 = arith.addi %145, %139 : vector<128xi32>
    %c0_91 = arith.constant 0 : index
    %c4_92 = arith.constant 4 : index
    %c0_93 = arith.constant 0 : index
    %147 = vector.load %arg4[%c0_91, %c4_92, %c0_93] : memref<1x24x128xi32, #tpu.memory_space<vmem>>, vector<1x1x128xi32>
    %148 = vector.shape_cast %147 : vector<1x1x128xi32> to vector<128xi32>
    %149 = vector.shape_cast %146 : vector<128xi32> to vector<1x1x128xi32>
    tpu.vector_store %arg4[%c0_91, %c4_92, %c0_93], %149 {strides = array<i32>} : memref<1x24x128xi32, #tpu.memory_space<vmem>>, vector<1x1x128xi32>,
    %c0_94 = arith.constant 0 : index
    %c12 = arith.constant 12 : index
    %c0_95 = arith.constant 0 : index
    %150 = vector.load %arg4[%c0_94, %c12, %c0_95] : memref<1x24x128xi32, #tpu.memory_space<vmem>>, vector<1x1x128xi32>
    %151 = vector.shape_cast %150 : vector<1x1x128xi32> to vector<128xi32>
    %152 = arith.addi %151, %141 : vector<128xi32>
    %c0_96 = arith.constant 0 : index
    %c12_97 = arith.constant 12 : index
    %c0_98 = arith.constant 0 : index
    %153 = vector.load %arg4[%c0_96, %c12_97, %c0_98] : memref<1x24x128xi32, #tpu.memory_space<vmem>>, vector<1x1x128xi32>
    %154 = vector.shape_cast %153 : vector<1x1x128xi32> to vector<128xi32>
    %155 = vector.shape_cast %152 : vector<128xi32> to vector<1x1x128xi32>
    tpu.vector_store %arg4[%c0_96, %c12_97, %c0_98], %155 {strides = array<i32>} : memref<1x24x128xi32, #tpu.memory_space<vmem>>, vector<1x1x128xi32>,
    %c0_99 = arith.constant 0 : index
    %c20 = arith.constant 20 : index
    %c0_100 = arith.constant 0 : index
    %156 = vector.load %arg4[%c0_99, %c20, %c0_100] : memref<1x24x128xi32, #tpu.memory_space<vmem>>, vector<1x1x128xi32>
    %157 = vector.shape_cast %156 : vector<1x1x128xi32> to vector<128xi32>
    %158 = arith.addi %157, %143 : vector<128xi32>
    %c0_101 = arith.constant 0 : index
    %c20_102 = arith.constant 20 : index
    %c0_103 = arith.constant 0 : index
    %159 = vector.load %arg4[%c0_101, %c20_102, %c0_103] : memref<1x24x128xi32, #tpu.memory_space<vmem>>, vector<1x1x128xi32>
    %160 = vector.shape_cast %159 : vector<1x1x128xi32> to vector<128xi32>
    %161 = vector.shape_cast %158 : vector<128xi32> to vector<1x1x128xi32>
    tpu.vector_store %arg4[%c0_101, %c20_102, %c0_103], %161 {strides = array<i32>} : memref<1x24x128xi32, #tpu.memory_space<vmem>>, vector<1x1x128xi32>,
    %c5_i32 = arith.constant 5 : i32
    %162 = vector.broadcast %c5_i32 : i32 to vector<8x128xi32>
    %163 = arith.cmpi eq, %14, %162 : vector<8x128xi32>
    %c5_i32_104 = arith.constant 5 : i32
    %164 = vector.broadcast %c5_i32_104 : i32 to vector<8x128xi32>
    %165 = arith.cmpi eq, %16, %164 : vector<8x128xi32>
    %166 = arith.andi %163, %165 : vector<8x128xi1>
    %167 = arith.extui %166 : vector<8x128xi1> to vector<8x128xi32>
    %cst_105 = arith.constant dense<0> : vector<128xi32>
    %168 = vector.multi_reduction <add>, %167, %cst_105 [0] : vector<8x128xi32> to vector<128xi32>
    %169 = arith.extui %165 : vector<8x128xi1> to vector<8x128xi32>
    %cst_106 = arith.constant dense<0> : vector<128xi32>
    %170 = vector.multi_reduction <add>, %169, %cst_106 [0] : vector<8x128xi32> to vector<128xi32>
    %171 = arith.extui %163 : vector<8x128xi1> to vector<8x128xi32>
    %cst_107 = arith.constant dense<0> : vector<128xi32>
    %172 = vector.multi_reduction <add>, %171, %cst_107 [0] : vector<8x128xi32> to vector<128xi32>
    %c0_108 = arith.constant 0 : index
    %c5 = arith.constant 5 : index
    %c0_109 = arith.constant 0 : index
    %173 = vector.load %arg4[%c0_108, %c5, %c0_109] : memref<1x24x128xi32, #tpu.memory_space<vmem>>, vector<1x1x128xi32>
    %174 = vector.shape_cast %173 : vector<1x1x128xi32> to vector<128xi32>
    %175 = arith.addi %174, %168 : vector<128xi32>
    %c0_110 = arith.constant 0 : index
    %c5_111 = arith.constant 5 : index
    %c0_112 = arith.constant 0 : index
    %176 = vector.load %arg4[%c0_110, %c5_111, %c0_112] : memref<1x24x128xi32, #tpu.memory_space<vmem>>, vector<1x1x128xi32>
    %177 = vector.shape_cast %176 : vector<1x1x128xi32> to vector<128xi32>
    %178 = vector.shape_cast %175 : vector<128xi32> to vector<1x1x128xi32>
    tpu.vector_store %arg4[%c0_110, %c5_111, %c0_112], %178 {strides = array<i32>} : memref<1x24x128xi32, #tpu.memory_space<vmem>>, vector<1x1x128xi32>,
    %c0_113 = arith.constant 0 : index
    %c13 = arith.constant 13 : index
    %c0_114 = arith.constant 0 : index
    %179 = vector.load %arg4[%c0_113, %c13, %c0_114] : memref<1x24x128xi32, #tpu.memory_space<vmem>>, vector<1x1x128xi32>
    %180 = vector.shape_cast %179 : vector<1x1x128xi32> to vector<128xi32>
    %181 = arith.addi %180, %170 : vector<128xi32>
    %c0_115 = arith.constant 0 : index
    %c13_116 = arith.constant 13 : index
    %c0_117 = arith.constant 0 : index
    %182 = vector.load %arg4[%c0_115, %c13_116, %c0_117] : memref<1x24x128xi32, #tpu.memory_space<vmem>>, vector<1x1x128xi32>
    %183 = vector.shape_cast %182 : vector<1x1x128xi32> to vector<128xi32>
    %184 = vector.shape_cast %181 : vector<128xi32> to vector<1x1x128xi32>
    tpu.vector_store %arg4[%c0_115, %c13_116, %c0_117], %184 {strides = array<i32>} : memref<1x24x128xi32, #tpu.memory_space<vmem>>, vector<1x1x128xi32>,
    %c0_118 = arith.constant 0 : index
    %c21 = arith.constant 21 : index
    %c0_119 = arith.constant 0 : index
    %185 = vector.load %arg4[%c0_118, %c21, %c0_119] : memref<1x24x128xi32, #tpu.memory_space<vmem>>, vector<1x1x128xi32>
    %186 = vector.shape_cast %185 : vector<1x1x128xi32> to vector<128xi32>
    %187 = arith.addi %186, %172 : vector<128xi32>
    %c0_120 = arith.constant 0 : index
    %c21_121 = arith.constant 21 : index
    %c0_122 = arith.constant 0 : index
    %188 = vector.load %arg4[%c0_120, %c21_121, %c0_122] : memref<1x24x128xi32, #tpu.memory_space<vmem>>, vector<1x1x128xi32>
    %189 = vector.shape_cast %188 : vector<1x1x128xi32> to vector<128xi32>
    %190 = vector.shape_cast %187 : vector<128xi32> to vector<1x1x128xi32>
    tpu.vector_store %arg4[%c0_120, %c21_121, %c0_122], %190 {strides = array<i32>} : memref<1x24x128xi32, #tpu.memory_space<vmem>>, vector<1x1x128xi32>,
    %c6_i32 = arith.constant 6 : i32
    %191 = vector.broadcast %c6_i32 : i32 to vector<8x128xi32>
    %192 = arith.cmpi eq, %14, %191 : vector<8x128xi32>
    %c6_i32_123 = arith.constant 6 : i32
    %193 = vector.broadcast %c6_i32_123 : i32 to vector<8x128xi32>
    %194 = arith.cmpi eq, %16, %193 : vector<8x128xi32>
    %195 = arith.andi %192, %194 : vector<8x128xi1>
    %196 = arith.extui %195 : vector<8x128xi1> to vector<8x128xi32>
    %cst_124 = arith.constant dense<0> : vector<128xi32>
    %197 = vector.multi_reduction <add>, %196, %cst_124 [0] : vector<8x128xi32> to vector<128xi32>
    %198 = arith.extui %194 : vector<8x128xi1> to vector<8x128xi32>
    %cst_125 = arith.constant dense<0> : vector<128xi32>
    %199 = vector.multi_reduction <add>, %198, %cst_125 [0] : vector<8x128xi32> to vector<128xi32>
    %200 = arith.extui %192 : vector<8x128xi1> to vector<8x128xi32>
    %cst_126 = arith.constant dense<0> : vector<128xi32>
    %201 = vector.multi_reduction <add>, %200, %cst_126 [0] : vector<8x128xi32> to vector<128xi32>
    %c0_127 = arith.constant 0 : index
    %c6 = arith.constant 6 : index
    %c0_128 = arith.constant 0 : index
    %202 = vector.load %arg4[%c0_127, %c6, %c0_128] : memref<1x24x128xi32, #tpu.memory_space<vmem>>, vector<1x1x128xi32>
    %203 = vector.shape_cast %202 : vector<1x1x128xi32> to vector<128xi32>
    %204 = arith.addi %203, %197 : vector<128xi32>
    %c0_129 = arith.constant 0 : index
    %c6_130 = arith.constant 6 : index
    %c0_131 = arith.constant 0 : index
    %205 = vector.load %arg4[%c0_129, %c6_130, %c0_131] : memref<1x24x128xi32, #tpu.memory_space<vmem>>, vector<1x1x128xi32>
    %206 = vector.shape_cast %205 : vector<1x1x128xi32> to vector<128xi32>
    %207 = vector.shape_cast %204 : vector<128xi32> to vector<1x1x128xi32>
    tpu.vector_store %arg4[%c0_129, %c6_130, %c0_131], %207 {strides = array<i32>} : memref<1x24x128xi32, #tpu.memory_space<vmem>>, vector<1x1x128xi32>,
    %c0_132 = arith.constant 0 : index
    %c14 = arith.constant 14 : index
    %c0_133 = arith.constant 0 : index
    %208 = vector.load %arg4[%c0_132, %c14, %c0_133] : memref<1x24x128xi32, #tpu.memory_space<vmem>>, vector<1x1x128xi32>
    %209 = vector.shape_cast %208 : vector<1x1x128xi32> to vector<128xi32>
    %210 = arith.addi %209, %199 : vector<128xi32>
    %c0_134 = arith.constant 0 : index
    %c14_135 = arith.constant 14 : index
    %c0_136 = arith.constant 0 : index
    %211 = vector.load %arg4[%c0_134, %c14_135, %c0_136] : memref<1x24x128xi32, #tpu.memory_space<vmem>>, vector<1x1x128xi32>
    %212 = vector.shape_cast %211 : vector<1x1x128xi32> to vector<128xi32>
    %213 = vector.shape_cast %210 : vector<128xi32> to vector<1x1x128xi32>
    tpu.vector_store %arg4[%c0_134, %c14_135, %c0_136], %213 {strides = array<i32>} : memref<1x24x128xi32, #tpu.memory_space<vmem>>, vector<1x1x128xi32>,
    %c0_137 = arith.constant 0 : index
    %c22 = arith.constant 22 : index
    %c0_138 = arith.constant 0 : index
    %214 = vector.load %arg4[%c0_137, %c22, %c0_138] : memref<1x24x128xi32, #tpu.memory_space<vmem>>, vector<1x1x128xi32>
    %215 = vector.shape_cast %214 : vector<1x1x128xi32> to vector<128xi32>
    %216 = arith.addi %215, %201 : vector<128xi32>
    %c0_139 = arith.constant 0 : index
    %c22_140 = arith.constant 22 : index
    %c0_141 = arith.constant 0 : index
    %217 = vector.load %arg4[%c0_139, %c22_140, %c0_141] : memref<1x24x128xi32, #tpu.memory_space<vmem>>, vector<1x1x128xi32>
    %218 = vector.shape_cast %217 : vector<1x1x128xi32> to vector<128xi32>
    %219 = vector.shape_cast %216 : vector<128xi32> to vector<1x1x128xi32>
    tpu.vector_store %arg4[%c0_139, %c22_140, %c0_141], %219 {strides = array<i32>} : memref<1x24x128xi32, #tpu.memory_space<vmem>>, vector<1x1x128xi32>,
    %c7_i32 = arith.constant 7 : i32
    %220 = vector.broadcast %c7_i32 : i32 to vector<8x128xi32>
    %221 = arith.cmpi eq, %14, %220 : vector<8x128xi32>
    %c7_i32_142 = arith.constant 7 : i32
    %222 = vector.broadcast %c7_i32_142 : i32 to vector<8x128xi32>
    %223 = arith.cmpi eq, %16, %222 : vector<8x128xi32>
    %224 = arith.andi %221, %223 : vector<8x128xi1>
    %225 = arith.extui %224 : vector<8x128xi1> to vector<8x128xi32>
    %cst_143 = arith.constant dense<0> : vector<128xi32>
    %226 = vector.multi_reduction <add>, %225, %cst_143 [0] : vector<8x128xi32> to vector<128xi32>
    %227 = arith.extui %223 : vector<8x128xi1> to vector<8x128xi32>
    %cst_144 = arith.constant dense<0> : vector<128xi32>
    %228 = vector.multi_reduction <add>, %227, %cst_144 [0] : vector<8x128xi32> to vector<128xi32>
    %229 = arith.extui %221 : vector<8x128xi1> to vector<8x128xi32>
    %cst_145 = arith.constant dense<0> : vector<128xi32>
    %230 = vector.multi_reduction <add>, %229, %cst_145 [0] : vector<8x128xi32> to vector<128xi32>
    %c0_146 = arith.constant 0 : index
    %c7 = arith.constant 7 : index
    %c0_147 = arith.constant 0 : index
    %231 = vector.load %arg4[%c0_146, %c7, %c0_147] : memref<1x24x128xi32, #tpu.memory_space<vmem>>, vector<1x1x128xi32>
    %232 = vector.shape_cast %231 : vector<1x1x128xi32> to vector<128xi32>
    %233 = arith.addi %232, %226 : vector<128xi32>
    %c0_148 = arith.constant 0 : index
    %c7_149 = arith.constant 7 : index
    %c0_150 = arith.constant 0 : index
    %234 = vector.load %arg4[%c0_148, %c7_149, %c0_150] : memref<1x24x128xi32, #tpu.memory_space<vmem>>, vector<1x1x128xi32>
    %235 = vector.shape_cast %234 : vector<1x1x128xi32> to vector<128xi32>
    %236 = vector.shape_cast %233 : vector<128xi32> to vector<1x1x128xi32>
    tpu.vector_store %arg4[%c0_148, %c7_149, %c0_150], %236 {strides = array<i32>} : memref<1x24x128xi32, #tpu.memory_space<vmem>>, vector<1x1x128xi32>,
    %c0_151 = arith.constant 0 : index
    %c15 = arith.constant 15 : index
    %c0_152 = arith.constant 0 : index
    %237 = vector.load %arg4[%c0_151, %c15, %c0_152] : memref<1x24x128xi32, #tpu.memory_space<vmem>>, vector<1x1x128xi32>
    %238 = vector.shape_cast %237 : vector<1x1x128xi32> to vector<128xi32>
    %239 = arith.addi %238, %228 : vector<128xi32>
    %c0_153 = arith.constant 0 : index
    %c15_154 = arith.constant 15 : index
    %c0_155 = arith.constant 0 : index
    %240 = vector.load %arg4[%c0_153, %c15_154, %c0_155] : memref<1x24x128xi32, #tpu.memory_space<vmem>>, vector<1x1x128xi32>
    %241 = vector.shape_cast %240 : vector<1x1x128xi32> to vector<128xi32>
    %242 = vector.shape_cast %239 : vector<128xi32> to vector<1x1x128xi32>
    tpu.vector_store %arg4[%c0_153, %c15_154, %c0_155], %242 {strides = array<i32>} : memref<1x24x128xi32, #tpu.memory_space<vmem>>, vector<1x1x128xi32>,
    %c0_156 = arith.constant 0 : index
    %c23 = arith.constant 23 : index
    %c0_157 = arith.constant 0 : index
    %243 = vector.load %arg4[%c0_156, %c23, %c0_157] : memref<1x24x128xi32, #tpu.memory_space<vmem>>, vector<1x1x128xi32>
    %244 = vector.shape_cast %243 : vector<1x1x128xi32> to vector<128xi32>
    %245 = arith.addi %244, %230 : vector<128xi32>
    %c0_158 = arith.constant 0 : index
    %c23_159 = arith.constant 23 : index
    %c0_160 = arith.constant 0 : index
    %246 = vector.load %arg4[%c0_158, %c23_159, %c0_160] : memref<1x24x128xi32, #tpu.memory_space<vmem>>, vector<1x1x128xi32>
    %247 = vector.shape_cast %246 : vector<1x1x128xi32> to vector<128xi32>
    %248 = vector.shape_cast %245 : vector<128xi32> to vector<1x1x128xi32>
    tpu.vector_store %arg4[%c0_158, %c23_159, %c0_160], %248 {strides = array<i32>} : memref<1x24x128xi32, #tpu.memory_space<vmem>>, vector<1x1x128xi32>,
    return
  }
  func.func @transform_0(%arg0: i32, %arg1: i32) -> (i32, i32) {
    %c1_i32 = arith.constant 1 : i32
    %0 = arith.muli %arg0, %c1_i32 : i32
    %1 = arith.addi %0, %arg1 : i32
    %c0_i32 = arith.constant 0 : i32
    %2 = arith.minsi %1, %c0_i32 : i32
    %c0_i32_0 = arith.constant 0 : i32
    %c0_i32_1 = arith.constant 0 : i32
    return %2, %c0_i32_0 : i32, i32
  }
  func.func @transform_1(%arg0: i32, %arg1: i32) -> (i32, i32) {
    %c1_i32 = arith.constant 1 : i32
    %0 = arith.muli %arg0, %c1_i32 : i32
    %1 = arith.addi %0, %arg1 : i32
    %c0_i32 = arith.constant 0 : i32
    %2 = arith.minsi %1, %c0_i32 : i32
    %c0_i32_0 = arith.constant 0 : i32
    %c0_i32_1 = arith.constant 0 : i32
    return %2, %c0_i32_0 : i32, i32
  }
  func.func @transform_2(%arg0: i32, %arg1: i32) -> (i32, i32, i32) {
    %c0_i32 = arith.constant 0 : i32
    %c0_i32_0 = arith.constant 0 : i32
    %c0_i32_1 = arith.constant 0 : i32
    return %arg0, %c0_i32, %c0_i32_0 : i32, i32, i32
  }
}

</mosaic_0001>

<llo_original>
// kernel: tpu_custom_call.1
$region0: #{tpu_custom_call.1}
  #allocation0 [shape = 'u32[]', space=smem, size = 0x4, offset = 0x4, fixed_abs, tag = 'smem constant byte address 0x4 - core index']
  #allocation1 [shape = 'u32[144,128]{1,0:T(1,128)}', space=vmem, size = 0x12000, scoped, tag = 'internal scratch']
  %s0 = inlined_call_operand.hbm [shape: s32[8,128], index: 0, kind: input, shape index: {}]
  %s1 = inlined_call_operand.hbm [shape: s32[8,128], index: 1, kind: input, shape index: {}]
  %s2 = inlined_call_operand.hbm [shape: s32[2,24,128], index: 2, kind: output, shape index: {}]
  %s3 = sld [smem:[#allocation0]]
  $region53: #{tpu_custom_call.1} parent=0
    _
  %s5 = ssub.s32 1, %s3
  %s6 = scalar_select 0, %s5, %s3
  $region1: #{tpu_custom_call.1} parent=0
    #allocation2 [shape = 'u8[8192]{0}', space=vmem, size = 0x2000, scoped, tag = 'input window, operand 0']
    #allocation3 [shape = 's32[2]{0}', space=sflag, size = 0x8, scoped, tag = 'scoped memory for tpu_custom_call.1']
    #allocation4 [shape = 's32[2]{0}', space=sflag, size = 0x8, scoped, tag = 'scoped memory for tpu_custom_call.1']
    #allocation5 [shape = 'u8[8192]{0}', space=vmem, size = 0x2000, scoped, tag = 'input window, operand 1']
    #allocation6 [shape = 's32[2]{0}', space=sflag, size = 0x8, scoped, tag = 'scoped memory for tpu_custom_call.1']
    #allocation7 [shape = 'u8[24576]{0}', space=vmem, size = 0x6000, scoped, tag = 'output window, operand 0']
    %7 = vsyncpa [#allocation3], 0
    %s8 = scalar_lea.sflag [#allocation3], 1
    %9 = vsyncpa %s8, 0
    %10 = vsyncpa [#allocation6], 0
    %s11 = scalar_lea.sflag [#allocation6], 1
    %12 = vsyncpa %s11, 0
    %13 = vsyncpa [#allocation4], 0
    %s14 = scalar_lea.sflag [#allocation4], 1
    %15 = vsyncpa %s14, 0
    loop: start=0, step=1, limit=4
    $region2: #{tpu_custom_call.1} parent=1 // loop_pre_header
      _
    $region3: #{tpu_custom_call.1} parent=1 // loop_header
      %s17 = sphi 0, %s21
      %p18 = scmp.ge.s32.totalorder %s17, 4
      %s24 = sphi 0, %s36
      %s25 = sphi 0, %s32
      %s26 = sphi 0, %s24
      %s27 = sphi 0, %s25
      %s28 = sphi 0, %s26
      %s29 = sphi 0, %s27
      %s45 = sphi 0, %s47
      %s48 = sphi 0, %s45
      %s49 = sphi 0, %s48
      %s65 = sphi 0, %s49
      %s77 = sphi 0, %s79
      %s80 = sphi 0, %s77
      %s81 = sphi 0, %s80
      %s97 = sphi 0, %s81
      %s103 = sphi 0, %s105
      %s106 = sphi 0, %s103
      %s107 = sphi 0, %s106
      %s123 = sphi 0, %s107
    $region4: #{tpu_custom_call.1} parent=1 // loop_header_branch
      %20 = sbr.rel (%p18) target = $region8
    $region5: #{tpu_custom_call.1} parent=1 // loop_body
      %s22 = ssub.s32 %s17, 1
      %s23 = ssub.s32 %s17, 2
      %s30 = sadd.s32 1, %s25
      %p31 = scmp.ge.s32.totalorder %s30, 1
      %s32 = scalar_select %p31, 0, %s30
      %s33 = sadd.s32 1, %s24
      %s34 = scalar_select %p31, %s33, %s24
      %p35 = scmp.ge.s32.totalorder %s34, 2
      %s36 = scalar_select %p35, 0, %s34
      %s37 = sadd.s32 %s24, %s25
      %p38 = scmp.lt.s32.totalorder %s37, 0
      %s39 = scalar_select %p38, %s37, 0
      %s40 = sadd.s32 %s36, %s32
      %p41 = scmp.lt.s32.totalorder %s40, 0
      %s42 = scalar_select %p41, %s40, 0
      %s43 = ssub.s32 %s39, %s42
      %p44 = scmp.eq.s32.totalorder %s43, 0
      %s46 = sadd.s32 %s45, 1
      %s47 = scalar_select %p44, %s45, %s46
      %p50 = pneg %p44
      %p51 = scmp.eq.s32.totalorder %s17, 1
      %p52 = por %p50, %p51
      %p53 = scmp.ne.s32.totalorder %s45, %s48
      %p54 = scmp.eq.s32.totalorder %s17, 0
      %p55 = por %p53, %p54
      %p56 = scmp.ne.s32.totalorder %s45, %s48
      %p57 = scmp.eq.s32.totalorder %s22, 1
      %p58 = por %p56, %p57
      %p59 = scmp.ne.s32.totalorder %s48, %s49
      %p60 = scmp.eq.s32.totalorder %s22, 0
      %p61 = por %p59, %p60
      %p62 = scmp.ne.s32.totalorder %s48, %s49
      %p63 = scmp.eq.s32.totalorder %s23, 1
      %p64 = por %p62, %p63
      %p66 = scmp.ne.s32.totalorder %s49, %s65
      %p67 = scmp.eq.s32.totalorder %s23, 0
      %p68 = por %p66, %p67
      %s69 = sadd.s32 %s24, %s25
      %p70 = scmp.lt.s32.totalorder %s69, 0
      %s71 = scalar_select %p70, %s69, 0
      %s72 = sadd.s32 %s36, %s32
      %p73 = scmp.lt.s32.totalorder %s72, 0
      %s74 = scalar_select %p73, %s72, 0
      %s75 = ssub.s32 %s71, %s74
      %p76 = scmp.eq.s32.totalorder %s75, 0
      %s78 = sadd.s32 %s77, 1
      %s79 = scalar_select %p76, %s77, %s78
      %p82 = pneg %p76
      %p83 = scmp.eq.s32.totalorder %s17, 1
      %p84 = por %p82, %p83
      %p85 = scmp.ne.s32.totalorder %s77, %s80
      %p86 = scmp.eq.s32.totalorder %s17, 0
      %p87 = por %p85, %p86
      %p88 = scmp.ne.s32.totalorder %s77, %s80
      %p89 = scmp.eq.s32.totalorder %s22, 1
      %p90 = por %p88, %p89
      %p91 = scmp.ne.s32.totalorder %s80, %s81
      %p92 = scmp.eq.s32.totalorder %s22, 0
      %p93 = por %p91, %p92
      %p94 = scmp.ne.s32.totalorder %s80, %s81
      %p95 = scmp.eq.s32.totalorder %s23, 1
      %p96 = por %p94, %p95
      %p98 = scmp.ne.s32.totalorder %s81, %s97
      %p99 = scmp.eq.s32.totalorder %s23, 0
      %p100 = por %p98, %p99
      %s101 = ssub.s32 %s24, %s36
      %p102 = scmp.eq.s32.totalorder %s101, 0
      %s104 = sadd.s32 %s103, 1
      %s105 = scalar_select %p102, %s103, %s104
      %p108 = pneg %p102
      %p109 = scmp.eq.s32.totalorder %s17, 1
      %p110 = por %p108, %p109
      %p111 = scmp.ne.s32.totalorder %s103, %s106
      %p112 = scmp.eq.s32.totalorder %s17, 0
      %p113 = por %p111, %p112
      %p114 = scmp.ne.s32.totalorder %s103, %s106
      %p115 = scmp.eq.s32.totalorder %s22, 1
      %p116 = por %p114, %p115
      %p117 = scmp.ne.s32.totalorder %s106, %s107
      %p118 = scmp.eq.s32.totalorder %s22, 0
      %p119 = por %p117, %p118
      %p120 = scmp.ne.s32.totalorder %s106, %s107
      %p121 = scmp.eq.s32.totalorder %s23, 1
      %p122 = por %p120, %p121
      %p124 = scmp.ne.s32.totalorder %s107, %s123
      %p125 = scmp.eq.s32.totalorder %s23, 0
      %p126 = por %p124, %p125
      %p127 = scmp.le.s32.totalorder 1, %s17
      %p128 = scmp.lt.s32.totalorder %s17, 3
      %p129 = pnand %p127, %p128
      %p130 = pneg %p129
      // Predicated region
      $region9: #{tpu_custom_call.1} parent=5 // pred_check
        _
      $region10: #{tpu_custom_call.1} parent=5 // pred_check_branch
        %132 = sbr.rel (%p129) target = $region12
      $region11: #{tpu_custom_call.1} parent=5 // pred_region
        %s133 = ssub.s32 %s17, 1
      $region12: #{tpu_custom_call.1} parent=5 // pred_fallthru
        _
      %p134 = scmp.lt.s32.totalorder %s17, 2
      // Predicated region
      $region13: #{tpu_custom_call.1} parent=5 // pred_check
        %p135 = pneg %p134
      $region14: #{tpu_custom_call.1} parent=5 // pred_check_branch
        %137 = sbr.rel (%p135) target = $region16
      $region15: #{tpu_custom_call.1} parent=5 // pred_region
        // Predicated region
        $region17: #{tpu_custom_call.1} parent=15 // pred_check
          %p138 = pneg %p55
        $region18: #{tpu_custom_call.1} parent=15 // pred_check_branch
          %140 = sbr.rel (%p138) target = $region20
        $region19: #{tpu_custom_call.1} parent=15 // pred_region
          %s141 = sand.u32 %s45, 1
          %s142 = scalar_lea.sflag [#allocation3], %s141
          %s143 = sand.u32 %s45, 1
          %s144 = smul.addr %s143, 8
          %s145 = scalar_lea.vmem [#allocation2], %s144
          %s146 = sadd.s32 %s24, %s25
          %p147 = scmp.lt.s32.totalorder %s146, 0
          %s148 = scalar_select %p147, %s146, 0
          %s150 = ssub.s32 128, 128
          %151 = vsyncadd %s142, %s150
          %s152 = smul.addr %s148, 128
          %s153 = scalar_lea.hbm %s0, %s152
          %s155 = sshll.u32 %s145, 4
          %s156 = int_to_ptr.vmem [resolvable:$true] %s155
          %158 = dma.hbm_to_vmem [thread:$0]  %s153, 128, %s156, %s142
        $region20: #{tpu_custom_call.1} parent=15 // pred_fallthru
          _
        // Predicated region
        $region21: #{tpu_custom_call.1} parent=15 // pred_check
          %p159 = pneg %p87
        $region22: #{tpu_custom_call.1} parent=15 // pred_check_branch
          %161 = sbr.rel (%p159) target = $region24
        $region23: #{tpu_custom_call.1} parent=15 // pred_region
          %s162 = sand.u32 %s77, 1
          %s163 = scalar_lea.sflag [#allocation6], %s162
          %s164 = sand.u32 %s77, 1
          %s165 = smul.addr %s164, 8
          %s166 = scalar_lea.vmem [#allocation5], %s165
          %s167 = sadd.s32 %s24, %s25
          %p168 = scmp.lt.s32.totalorder %s167, 0
          %s169 = scalar_select %p168, %s167, 0
          %s171 = ssub.s32 128, 128
          %172 = vsyncadd %s163, %s171
          %s173 = smul.addr %s169, 128
          %s174 = scalar_lea.hbm %s1, %s173
          %s176 = sshll.u32 %s166, 4
          %s177 = int_to_ptr.vmem [resolvable:$true] %s176
          %179 = dma.hbm_to_vmem [thread:$0]  %s174, 128, %s177, %s163
        $region24: #{tpu_custom_call.1} parent=15 // pred_fallthru
          _
      $region16: #{tpu_custom_call.1} parent=5 // pred_fallthru
        _
      %p180 = scmp.le.s32.totalorder 1, %s17
      %p181 = scmp.lt.s32.totalorder %s17, 3
      %p182 = pnand %p180, %p181
      %p183 = pneg %p182
      // Predicated region
      $region25: #{tpu_custom_call.1} parent=5 // pred_check
        _
      $region26: #{tpu_custom_call.1} parent=5 // pred_check_branch
        %185 = sbr.rel (%p182) target = $region28
      $region27: #{tpu_custom_call.1} parent=5 // pred_region
        %s186 = ssub.s32 %s17, 1
        %s187 = sand.u32 %s48, 1
        %s188 = scalar_lea.sflag [#allocation3], %s187
        %s189 = sand.u32 %s48, 1
        %s190 = smul.addr %s189, 8
        %s191 = scalar_lea.vmem [#allocation2], %s190
        // Predicated region
        $region29: #{tpu_custom_call.1} parent=27 // pred_check
          %p192 = pneg %p61
        $region30: #{tpu_custom_call.1} parent=27 // pred_check_branch
          %194 = sbr.rel (%p192) target = $region32
        $region31: #{tpu_custom_call.1} parent=27 // pred_region
          %195 = dma.done %s188, 128
        $region32: #{tpu_custom_call.1} parent=27 // pred_fallthru
          _
        %s196 = sand.u32 %s80, 1
        %s197 = scalar_lea.sflag [#allocation6], %s196
        %s198 = sand.u32 %s80, 1
        %s199 = smul.addr %s198, 8
        %s200 = scalar_lea.vmem [#allocation5], %s199
        // Predicated region
        $region33: #{tpu_custom_call.1} parent=27 // pred_check
          %p201 = pneg %p93
        $region34: #{tpu_custom_call.1} parent=27 // pred_check_branch
          %203 = sbr.rel (%p201) target = $region36
        $region35: #{tpu_custom_call.1} parent=27 // pred_region
          %204 = dma.done %s197, 128
        $region36: #{tpu_custom_call.1} parent=27 // pred_fallthru
          _
        %s205 = sand.u32 %s48, 1
        %s206 = scalar_lea.sflag [#allocation3], %s205
        %s207 = sand.u32 %s48, 1
        %s208 = smul.addr %s207, 8
        %s209 = scalar_lea.vmem [#allocation2], %s208
        %p210 = pneg %p61
        %p211 = pneg %p58
        %s212 = sand.u32 %s80, 1
        %s213 = scalar_lea.sflag [#allocation6], %s212
        %s214 = sand.u32 %s80, 1
        %s215 = smul.addr %s214, 8
        %s216 = scalar_lea.vmem [#allocation5], %s215
        %p217 = pneg %p93
        %p218 = pneg %p90
        %p219 = pneg %p119
        %p220 = pneg %p116
        %s221 = sand.u32 %s106, 1
        %s222 = scalar_lea.sflag [#allocation4], %s221
        %s223 = sand.u32 %s106, 1
        %s224 = smul.addr %s223, 24
        %s225 = scalar_lea.vmem [#allocation7], %s224
        %s226 = sadd.s32 %s26, %s27
        %p227 = scmp.lt.s32.totalorder %s226, 0
        %s228 = scalar_select %p227, %s226, 0
        %s229 = sadd.s32 %s26, %s27
        %p230 = scmp.lt.s32.totalorder %s229, 0
        %s231 = scalar_select %p230, %s229, 0
        %p232 = scmp.eq.s32.totalorder %s27, 0
        // Predicated region
        $region37: #{tpu_custom_call.1} parent=27 // pred_check
          %p233 = pneg %p232
        $region38: #{tpu_custom_call.1} parent=27 // pred_check_branch
          %235 = sbr.rel (%p233) target = $region40
        $region39: #{tpu_custom_call.1} parent=27 // pred_region
          %236 = vst [vmem:[%s225] sm:$0xff] 0
          %237 = vst [vmem:[%s225 + $0x8] sm:$0xff] 0
          %238 = vst [vmem:[%s225 + $0x10] sm:$0xff] 0
        $region40: #{tpu_custom_call.1} parent=27 // pred_fallthru
          _
        %v239 = vld [vmem:[%s191] sm:$0xff]
        %v240 = vld [vmem:[%s200] sm:$0xff]
        %s241 = sadd.s32 %s26, %s27
        %s242 = smul.u32 %s241, 8
        %v243 = vlaneseq
        %v244 = vshrl.u32 %v243, 7
        %v245 = vstv %s242
        %v246 = vadd.s32 %v245, %v244
        %vm247 = vcmp.lt.s32.totalorder %v246, 8
        %v248 = vsel %vm247, %v239, 8
        %v249 = vsel %vm247, %v240, 8
        %vm250 = vcmp.eq.s32.totalorder %v248, 0
        %vm251 = vcmp.eq.s32.totalorder %v249, 0
        %vm252 = vmand %vm250, %vm251
        %v253 = vsel %vm252, 1, 0
        %v254 = vrot.slane %v253, 4
        %v255 = vadd.s32 %v253, %v254
        %v256 = vrot.slane %v255, 2
        %v257 = vadd.s32 %v255, %v256
        %v258 = vrot.slane %v257, 1
        %v259 = vadd.s32 %v257, %v258
        %v260 = vsel %vm251, 1, 0
        %v261 = vrot.slane %v260, 4
        %v262 = vadd.s32 %v260, %v261
        %v263 = vrot.slane %v262, 2
        %v264 = vadd.s32 %v262, %v263
        %v265 = vrot.slane %v264, 1
        %v266 = vadd.s32 %v264, %v265
        %v267 = vsel %vm250, 1, 0
        %v268 = vrot.slane %v267, 4
        %v269 = vadd.s32 %v267, %v268
        %v270 = vrot.slane %v269, 2
        %v271 = vadd.s32 %v269, %v270
        %v272 = vrot.slane %v271, 1
        %v273 = vadd.s32 %v271, %v272
        %v274 = vld [vmem:[%s225] sm:$0x1]
        %v275 = vadd.s32 %v274, %v259
        %276 = vst [vmem:[%s225] sm:$0x1] %v275
        %v277 = vld [vmem:[%s225 + $0x8] sm:$0x1]
        %v278 = vadd.s32 %v277, %v266
        %279 = vst [vmem:[%s225 + $0x8] sm:$0x1] %v278
        %v280 = vld [vmem:[%s225 + $0x10] sm:$0x1]
        %v281 = vadd.s32 %v280, %v273
        %282 = vst [vmem:[%s225 + $0x10] sm:$0x1] %v281
        %vm283 = vcmp.eq.s32.totalorder %v248, 1
        %vm284 = vcmp.eq.s32.totalorder %v249, 1
        %vm285 = vmand %vm283, %vm284
        %v286 = vsel %vm285, 1, 0
        %v287 = vrot.slane %v286, 4
        %v288 = vadd.s32 %v286, %v287
        %v289 = vrot.slane %v288, 2
        %v290 = vadd.s32 %v288, %v289
        %v291 = vrot.slane %v290, 1
        %v292 = vadd.s32 %v290, %v291
        %v293 = vsel %vm284, 1, 0
        %v294 = vrot.slane %v293, 4
        %v295 = vadd.s32 %v293, %v294
        %v296 = vrot.slane %v295, 2
        %v297 = vadd.s32 %v295, %v296
        %v298 = vrot.slane %v297, 1
        %v299 = vadd.s32 %v297, %v298
        %v300 = vsel %vm283, 1, 0
        %v301 = vrot.slane %v300, 4
        %v302 = vadd.s32 %v300, %v301
        %v303 = vrot.slane %v302, 2
        %v304 = vadd.s32 %v302, %v303
        %v305 = vrot.slane %v304, 1
        %v306 = vadd.s32 %v304, %v305
        %v307 = vld [vmem:[%s225 + $0x1] sm:$0x1]
        %v308 = vadd.s32 %v307, %v292
        %309 = vst [vmem:[%s225 + $0x1] sm:$0x1] %v308
        %v310 = vld [vmem:[%s225 + $0x9] sm:$0x1]
        %v311 = vadd.s32 %v310, %v299
        %312 = vst [vmem:[%s225 + $0x9] sm:$0x1] %v311
        %v313 = vld [vmem:[%s225 + $0x11] sm:$0x1]
        %v314 = vadd.s32 %v313, %v306
        %315 = vst [vmem:[%s225 + $0x11] sm:$0x1] %v314
        %vm316 = vcmp.eq.s32.totalorder %v248, 2
        %vm317 = vcmp.eq.s32.totalorder %v249, 2
        %vm318 = vmand %vm316, %vm317
        %v319 = vsel %vm318, 1, 0
        %v320 = vrot.slane %v319, 4
        %v321 = vadd.s32 %v319, %v320
        %v322 = vrot.slane %v321, 2
        %v323 = vadd.s32 %v321, %v322
        %v324 = vrot.slane %v323, 1
        %v325 = vadd.s32 %v323, %v324
        %v326 = vsel %vm317, 1, 0
        %v327 = vrot.slane %v326, 4
        %v328 = vadd.s32 %v326, %v327
        %v329 = vrot.slane %v328, 2
        %v330 = vadd.s32 %v328, %v329
        %v331 = vrot.slane %v330, 1
        %v332 = vadd.s32 %v330, %v331
        %v333 = vsel %vm316, 1, 0
        %v334 = vrot.slane %v333, 4
        %v335 = vadd.s32 %v333, %v334
        %v336 = vrot.slane %v335, 2
        %v337 = vadd.s32 %v335, %v336
        %v338 = vrot.slane %v337, 1
        %v339 = vadd.s32 %v337, %v338
        %v340 = vld [vmem:[%s225 + $0x2] sm:$0x1]
        %v341 = vadd.s32 %v340, %v325
        %342 = vst [vmem:[%s225 + $0x2] sm:$0x1] %v341
        %v343 = vld [vmem:[%s225 + $0xa] sm:$0x1]
        %v344 = vadd.s32 %v343, %v332
        %345 = vst [vmem:[%s225 + $0xa] sm:$0x1] %v344
        %v346 = vld [vmem:[%s225 + $0x12] sm:$0x1]
        %v347 = vadd.s32 %v346, %v339
        %348 = vst [vmem:[%s225 + $0x12] sm:$0x1] %v347
        %vm349 = vcmp.eq.s32.totalorder %v248, 3
        %vm350 = vcmp.eq.s32.totalorder %v249, 3
        %vm351 = vmand %vm349, %vm350
        %v352 = vsel %vm351, 1, 0
        %v353 = vrot.slane %v352, 4
        %v354 = vadd.s32 %v352, %v353
        %v355 = vrot.slane %v354, 2
        %v356 = vadd.s32 %v354, %v355
        %v357 = vrot.slane %v356, 1
        %v358 = vadd.s32 %v356, %v357
        %v359 = vsel %vm350, 1, 0
        %v360 = vrot.slane %v359, 4
        %v361 = vadd.s32 %v359, %v360
        %v362 = vrot.slane %v361, 2
        %v363 = vadd.s32 %v361, %v362
        %v364 = vrot.slane %v363, 1
        %v365 = vadd.s32 %v363, %v364
        %v366 = vsel %vm349, 1, 0
        %v367 = vrot.slane %v366, 4
        %v368 = vadd.s32 %v366, %v367
        %v369 = vrot.slane %v368, 2
        %v370 = vadd.s32 %v368, %v369
        %v371 = vrot.slane %v370, 1
        %v372 = vadd.s32 %v370, %v371
        %v373 = vld [vmem:[%s225 + $0x3] sm:$0x1]
        %v374 = vadd.s32 %v373, %v358
        %375 = vst [vmem:[%s225 + $0x3] sm:$0x1] %v374
        %v376 = vld [vmem:[%s225 + $0xb] sm:$0x1]
        %v377 = vadd.s32 %v376, %v365
        %378 = vst [vmem:[%s225 + $0xb] sm:$0x1] %v377
        %v379 = vld [vmem:[%s225 + $0x13] sm:$0x1]
        %v380 = vadd.s32 %v379, %v372
        %381 = vst [vmem:[%s225 + $0x13] sm:$0x1] %v380
        %vm382 = vcmp.eq.s32.totalorder %v248, 4
        %vm383 = vcmp.eq.s32.totalorder %v249, 4
        %vm384 = vmand %vm382, %vm383
        %v385 = vsel %vm384, 1, 0
        %v386 = vrot.slane %v385, 4
        %v387 = vadd.s32 %v385, %v386
        %v388 = vrot.slane %v387, 2
        %v389 = vadd.s32 %v387, %v388
        %v390 = vrot.slane %v389, 1
        %v391 = vadd.s32 %v389, %v390
        %v392 = vsel %vm383, 1, 0
        %v393 = vrot.slane %v392, 4
        %v394 = vadd.s32 %v392, %v393
        %v395 = vrot.slane %v394, 2
        %v396 = vadd.s32 %v394, %v395
        %v397 = vrot.slane %v396, 1
        %v398 = vadd.s32 %v396, %v397
        %v399 = vsel %vm382, 1, 0
        %v400 = vrot.slane %v399, 4
        %v401 = vadd.s32 %v399, %v400
        %v402 = vrot.slane %v401, 2
        %v403 = vadd.s32 %v401, %v402
        %v404 = vrot.slane %v403, 1
        %v405 = vadd.s32 %v403, %v404
        %v406 = vld [vmem:[%s225 + $0x4] sm:$0x1]
        %v407 = vadd.s32 %v406, %v391
        %408 = vst [vmem:[%s225 + $0x4] sm:$0x1] %v407
        %v409 = vld [vmem:[%s225 + $0xc] sm:$0x1]
        %v410 = vadd.s32 %v409, %v398
        %411 = vst [vmem:[%s225 + $0xc] sm:$0x1] %v410
        %v412 = vld [vmem:[%s225 + $0x14] sm:$0x1]
        %v413 = vadd.s32 %v412, %v405
        %414 = vst [vmem:[%s225 + $0x14] sm:$0x1] %v413
        %vm415 = vcmp.eq.s32.totalorder %v248, 5
        %vm416 = vcmp.eq.s32.totalorder %v249, 5
        %vm417 = vmand %vm415, %vm416
        %v418 = vsel %vm417, 1, 0
        %v419 = vrot.slane %v418, 4
        %v420 = vadd.s32 %v418, %v419
        %v421 = vrot.slane %v420, 2
        %v422 = vadd.s32 %v420, %v421
        %v423 = vrot.slane %v422, 1
        %v424 = vadd.s32 %v422, %v423
        %v425 = vsel %vm416, 1, 0
        %v426 = vrot.slane %v425, 4
        %v427 = vadd.s32 %v425, %v426
        %v428 = vrot.slane %v427, 2
        %v429 = vadd.s32 %v427, %v428
        %v430 = vrot.slane %v429, 1
        %v431 = vadd.s32 %v429, %v430
        %v432 = vsel %vm415, 1, 0
        %v433 = vrot.slane %v432, 4
        %v434 = vadd.s32 %v432, %v433
        %v435 = vrot.slane %v434, 2
        %v436 = vadd.s32 %v434, %v435
        %v437 = vrot.slane %v436, 1
        %v438 = vadd.s32 %v436, %v437
        %v439 = vld [vmem:[%s225 + $0x5] sm:$0x1]
        %v440 = vadd.s32 %v439, %v424
        %441 = vst [vmem:[%s225 + $0x5] sm:$0x1] %v440
        %v442 = vld [vmem:[%s225 + $0xd] sm:$0x1]
        %v443 = vadd.s32 %v442, %v431
        %444 = vst [vmem:[%s225 + $0xd] sm:$0x1] %v443
        %v445 = vld [vmem:[%s225 + $0x15] sm:$0x1]
        %v446 = vadd.s32 %v445, %v438
        %447 = vst [vmem:[%s225 + $0x15] sm:$0x1] %v446
        %vm448 = vcmp.eq.s32.totalorder %v248, 6
        %vm449 = vcmp.eq.s32.totalorder %v249, 6
        %vm450 = vmand %vm448, %vm449
        %v451 = vsel %vm450, 1, 0
        %v452 = vrot.slane %v451, 4
        %v453 = vadd.s32 %v451, %v452
        %v454 = vrot.slane %v453, 2
        %v455 = vadd.s32 %v453, %v454
        %v456 = vrot.slane %v455, 1
        %v457 = vadd.s32 %v455, %v456
        %v458 = vsel %vm449, 1, 0
        %v459 = vrot.slane %v458, 4
        %v460 = vadd.s32 %v458, %v459
        %v461 = vrot.slane %v460, 2
        %v462 = vadd.s32 %v460, %v461
        %v463 = vrot.slane %v462, 1
        %v464 = vadd.s32 %v462, %v463
        %v465 = vsel %vm448, 1, 0
        %v466 = vrot.slane %v465, 4
        %v467 = vadd.s32 %v465, %v466
        %v468 = vrot.slane %v467, 2
        %v469 = vadd.s32 %v467, %v468
        %v470 = vrot.slane %v469, 1
        %v471 = vadd.s32 %v469, %v470
        %v472 = vld [vmem:[%s225 + $0x6] sm:$0x1]
        %v473 = vadd.s32 %v472, %v457
        %474 = vst [vmem:[%s225 + $0x6] sm:$0x1] %v473
        %v475 = vld [vmem:[%s225 + $0xe] sm:$0x1]
        %v476 = vadd.s32 %v475, %v464
        %477 = vst [vmem:[%s225 + $0xe] sm:$0x1] %v476
        %v478 = vld [vmem:[%s225 + $0x16] sm:$0x1]
        %v479 = vadd.s32 %v478, %v471
        %480 = vst [vmem:[%s225 + $0x16] sm:$0x1] %v479
        %vm481 = vcmp.eq.s32.totalorder %v248, 7
        %vm482 = vcmp.eq.s32.totalorder %v249, 7
        %vm483 = vmand %vm481, %vm482
        %v484 = vsel %vm483, 1, 0
        %v485 = vrot.slane %v484, 4
        %v486 = vadd.s32 %v484, %v485
        %v487 = vrot.slane %v486, 2
        %v488 = vadd.s32 %v486, %v487
        %v489 = vrot.slane %v488, 1
        %v490 = vadd.s32 %v488, %v489
        %v491 = vsel %vm482, 1, 0
        %v492 = vrot.slane %v491, 4
        %v493 = vadd.s32 %v491, %v492
        %v494 = vrot.slane %v493, 2
        %v495 = vadd.s32 %v493, %v494
        %v496 = vrot.slane %v495, 1
        %v497 = vadd.s32 %v495, %v496
        %v498 = vsel %vm481, 1, 0
        %v499 = vrot.slane %v498, 4
        %v500 = vadd.s32 %v498, %v499
        %v501 = vrot.slane %v500, 2
        %v502 = vadd.s32 %v500, %v501
        %v503 = vrot.slane %v502, 1
        %v504 = vadd.s32 %v502, %v503
        %v505 = vld [vmem:[%s225 + $0x7] sm:$0x1]
        %v506 = vadd.s32 %v505, %v490
        %507 = vst [vmem:[%s225 + $0x7] sm:$0x1] %v506
        %v508 = vld [vmem:[%s225 + $0xf] sm:$0x1]
        %v509 = vadd.s32 %v508, %v497
        %510 = vst [vmem:[%s225 + $0xf] sm:$0x1] %v509
        %v511 = vld [vmem:[%s225 + $0x17] sm:$0x1]
        %v512 = vadd.s32 %v511, %v504
        %513 = vst [vmem:[%s225 + $0x17] sm:$0x1] %v512
        %s514 = sand.u32 %s106, 1
        %s515 = scalar_lea.sflag [#allocation4], %s514
        %s516 = sand.u32 %s106, 1
        %s517 = smul.addr %s516, 24
        %s518 = scalar_lea.vmem [#allocation7], %s517
        // Predicated region
        $region41: #{tpu_custom_call.1} parent=27 // pred_check
          %p519 = pneg %p116
        $region42: #{tpu_custom_call.1} parent=27 // pred_check_branch
          %521 = sbr.rel (%p519) target = $region44
        $region43: #{tpu_custom_call.1} parent=27 // pred_region
          %s523 = ssub.s32 384, 384
          %524 = vsyncadd %s515, %s523
          %s525 = smul.addr %s26, 3
          %s526 = smul.addr %s525, 128
          %s527 = scalar_lea.hbm %s2, %s526
          %s528 = sshll.u32 %s518, 4
          %s529 = int_to_ptr.vmem [resolvable:$true] %s528
          %534 = dma.vmem_to_hbm [thread:$0]  %s529, 384, %s527, %s515, 128, 128, 8
        $region44: #{tpu_custom_call.1} parent=27 // pred_fallthru
          _
      $region28: #{tpu_custom_call.1} parent=5 // pred_fallthru
        _
      %p535 = scmp.le.s32.totalorder 2, %s17
      // Predicated region
      $region45: #{tpu_custom_call.1} parent=5 // pred_check
        %p536 = pneg %p535
      $region46: #{tpu_custom_call.1} parent=5 // pred_check_branch
        %538 = sbr.rel (%p536) target = $region48
      $region47: #{tpu_custom_call.1} parent=5 // pred_region
        %s539 = ssub.s32 %s17, 2
        // Predicated region
        $region49: #{tpu_custom_call.1} parent=47 // pred_check
          %p540 = pneg %p122
        $region50: #{tpu_custom_call.1} parent=47 // pred_check_branch
          %542 = sbr.rel (%p540) target = $region52
        $region51: #{tpu_custom_call.1} parent=47 // pred_region
          %s543 = sand.u32 %s107, 1
          %s544 = scalar_lea.sflag [#allocation4], %s543
          %s545 = sand.u32 %s107, 1
          %s546 = smul.addr %s545, 24
          %s547 = scalar_lea.vmem [#allocation7], %s546
          %548 = dma.done %s544, 384
        $region52: #{tpu_custom_call.1} parent=47 // pred_fallthru
          _
      $region48: #{tpu_custom_call.1} parent=5 // pred_fallthru
        _
    $region6: #{tpu_custom_call.1} parent=1 // loop_footer
      %s21 = sadd.s32 1, %s17
    $region7: #{tpu_custom_call.1} parent=1 // loop_footer_branch
      %16 = sbr.rel target = $region3
    $region8: #{tpu_custom_call.1} parent=1 // loop_exit
      _
    %549 = vsyncpa [#allocation3], 1
    %s550 = scalar_lea.sflag [#allocation3], 1
    %551 = vsyncpa %s550, 1
    %552 = vsyncpa [#allocation6], 1
    %s553 = scalar_lea.sflag [#allocation6], 1
    %554 = vsyncpa %s553, 1
    %555 = vsyncpa [#allocation4], 1
    %s556 = scalar_lea.sflag [#allocation4], 1
    %557 = vsyncpa %s556, 1

</llo_original>
